<compile_context>
chip_gen: v6e
topology: v6e:2x2x1
jax: 0.10.0
libtpu: 0.0.40
codegen_flags: <defaults>
</compile_context>

<pallas_src>
import math
import functools

import numpy as np
import jax
import jax.numpy as jnp
from jax import lax
from jax.experimental import pallas as pl
from jax.experimental.pallas import tpu as pltpu


D_MODEL = 10
DROPOUT_P = 0.1
MAX_LEN = 50

# 32-bit hash constants as *numpy* scalars (inlined literals, never captured).
_H1 = np.uint32(0x9E3779B1)
_H2 = np.uint32(0x85EBCA77)
_M1 = np.uint32(0x85EBCA6B)
_M2 = np.uint32(0xC2B2AE35)


def make_pe(max_len: int, d_model: int) -> jnp.ndarray:
    """Deterministic sinusoidal table, identical to the PyTorch __init__."""
    position = jnp.arange(max_len, dtype=jnp.float32)[:, None]               # (L, 1)
    div_term = jnp.exp(
        jnp.arange(0, d_model, 2, dtype=jnp.float32) * (-math.log(10000.0) / d_model)
    )                                                                        # (D/2,)
    pe = jnp.zeros((max_len, d_model), jnp.float32)
    pe = pe.at[:, 0::2].set(jnp.sin(position * div_term))
    pe = pe.at[:, 1::2].set(jnp.cos(position * div_term))
    # unsqueeze(0).transpose(0, 1)  ->  (max_len, 1, d_model)
    return pe[:, None, :]


def _physical_vmem_bytes(default: int = 64 << 20) -> int:
    """Best-effort physical VMEM query; conservative fallback (v7x = 64 MiB)."""
    try:
        info = pltpu.get_tpu_info()
        v = int(getattr(info, "vmem_capacity_bytes", default))
        return v if v > 0 else default
    except Exception:
        return default


def _load_pe_tile(pe_ref, ts):
    """Return the (ts, 1, d) PE tile for the current seq block.

    If the PE block equals the x block (per-block DMA mode) just read it;
    otherwise the full (padded) PE slice is VMEM-resident and we slice it.
    """
    if pe_ref.shape[0] == ts:
        return pe_ref[...]
    start = pl.multiple_of(pl.program_id(0) * ts, ts)
    return pe_ref[pl.ds(start, ts), :, :]


def _pe_add_kernel(x_ref, pe_ref, o_ref):
    # Eval mode / p == 0: pure broadcast add (no seed input, no RNG).
    ts = x_ref.shape[0]
    o_ref[...] = (x_ref[...] + _load_pe_tile(pe_ref, ts)).astype(o_ref.dtype)


def _pe_add_dropout_kernel(seed_ref, x_ref, pe_ref, o_ref, *, p: float,
                           use_hw_prng: bool):
    # Hot path: broadcast-add of the positional table + inverted dropout.
    ts, b, d = x_ref.shape
    y = x_ref[...] + _load_pe_tile(pe_ref, ts)      # f32 (pe is f32)

    # Drop with probability p: keep iff u32 hash >= round(p * 2^32).
    thr = np.uint32(min(int(round(p * 4294967296.0)), 0xFFFFFFFF))

    if use_hw_prng:
        # Compiled-TPU fast path (review: keeps the kernel HBM-bound on v7x).
        pltpu.prng_seed(seed_ref[0], pl.program_id(0))
        h = pltpu.bitcast(pltpu.prng_random_bits((ts, b, d)), jnp.uint32)
    else:
        # Portable counter-based hash (interpret-mode safe).
        # TODO(synk): PyTorch's dropout RNG stream cannot be reproduced
        # bit-exactly; this is a deterministic seed+counter hash instead.
        # Scalar-unit work, computed once per block (block/seed offset folded):
        s_off = pl.program_id(0) * ts                       # int32 scalar
        base = ((s_off * (b * d)).astype(jnp.uint32) * _H1
                + seed_ref[0].astype(jnp.uint32) * _H2)     # u32 scalar
        # Per-element counter (int32 index math wraps only beyond ~2^31 elems).
        i0 = lax.broadcasted_iota(jnp.int32, (ts, b, d), 0)
        i1 = lax.broadcasted_iota(jnp.int32, (ts, b, d), 1)
        i2 = lax.broadcasted_iota(jnp.int32, (ts, b, d), 2)
        h = (i0 * (b * d) + i1 * d + i2).astype(jnp.uint32) * _H1 + base
        h = h ^ (h >> 16)
        h = h * _M1
        h = h ^ (h >> 13)
        h = h * _M2
        h = h ^ (h >> 16)

    keep = h >= thr                                          # P(keep) = 1 - p
    scale = 1.0 / (1.0 - p)
    o_ref[...] = jnp.where(keep, y * scale, 0.0).astype(o_ref.dtype)


def positional_encoding(x: jnp.ndarray,
                        pe: jnp.ndarray,
                        seed: int = 0,
                        p: float = DROPOUT_P,
                        train: bool = True,
                        *,
                        block_s: int | None = None,
                        use_hw_prng: bool = False) -> jnp.ndarray:
    """x: [seq_len, batch, d_model] (f32 or bf16). Returns same shape/dtype.

    `use_hw_prng=True` selects the TPU hardware PRNG for the dropout mask on
    compiled runs; the default counter-hash path also works in interpret mode.
    """
    seq_len, batch, d_model = x.shape
    pe_slice = pe[:seq_len].astype(jnp.float32)     # (S, 1, D); glue stays in JAX

    if train and p >= 1.0:
        return jnp.zeros_like(x)                    # torch dropout(p=1) -> all zeros

    # ---- generation-aware seq tiling -------------------------------------
    phys_vmem = _physical_vmem_bytes()
    # x-tile byte budget: ~1/16 of physical VMEM, clamped to [2 MiB, 8 MiB]
    # (128 MiB -> 8 MiB on v5e/v6e, 64 MiB -> 4 MiB on v7x).
    tile_budget = int(min(8 << 20, max(2 << 20, phys_vmem // 16)))
    bytes_per_row = batch * d_model * x.dtype.itemsize
    if block_s is None:
        rows_cap = max(1, tile_budget // max(bytes_per_row, 1))
        # Keep >=~4 grid blocks on long sequences so both v7x TCs stream data.
        rows_for_blocks = max(8, pl.cdiv(seq_len, 4))
        block_s = max(1, min(seq_len, rows_cap, rows_for_blocks))
    num_blocks = pl.cdiv(seq_len, block_s)
    grid = (num_blocks,)

    # ---- PE handling: VMEM-resident at small batch, per-block DMA otherwise
    pe_bytes_full = num_blocks * block_s * d_model * pe_slice.dtype.itemsize
    pe_resident = (batch <= 8) and (num_blocks > 1) and (pe_bytes_full <= (2 << 20))
    if pe_resident:
        s_pad = num_blocks * block_s
        pe_arr = (pe_slice if s_pad == seq_len
                  else jnp.pad(pe_slice, ((0, s_pad - seq_len), (0, 0), (0, 0))))
        pe_spec = pl.BlockSpec((s_pad, 1, d_model), lambda i: (0, 0, 0))
        pe_tile_bytes = pe_bytes_full
    else:
        pe_arr = pe_slice
        pe_spec = pl.BlockSpec((block_s, 1, d_model), lambda i: (i, 0, 0))
        pe_tile_bytes = block_s * d_model * pe_slice.dtype.itemsize

    x_spec = pl.BlockSpec((block_s, batch, d_model), lambda i: (i, 0, 0))
    out_spec = pl.BlockSpec((block_s, batch, d_model), lambda i: (i, 0, 0))

    # Double-buffered x + out (+ pe) with headroom; stays <= 3/4 of physical.
    x_tile_bytes = block_s * bytes_per_row
    need = 2 * (2 * x_tile_bytes + pe_tile_bytes) + (4 << 20)
    vmem_limit = int(min(max(need, 32 << 20), phys_vmem * 3 // 4))
    cparams = pltpu.CompilerParams(dimension_semantics=("parallel",),
                                   vmem_limit_bytes=vmem_limit)

    out_shape = jax.ShapeDtypeStruct(x.shape, x.dtype)

    if train and p > 0.0:
        seed_arr = jnp.asarray([seed], dtype=jnp.int32)
        kernel = functools.partial(_pe_add_dropout_kernel, p=float(p),
                                   use_hw_prng=bool(use_hw_prng))
        return pl.pallas_call(
            kernel,
            out_shape=out_shape,
            grid=grid,
            in_specs=[
                pl.BlockSpec(memory_space=pltpu.MemorySpace.SMEM),   # seed scalar
                x_spec,
                pe_spec,
            ],
            out_specs=out_spec,
            compiler_params=cparams,
        )(seed_arr, x, pe_arr)

    return pl.pallas_call(
        _pe_add_kernel,
        out_shape=out_shape,
        grid=grid,
        in_specs=[x_spec, pe_spec],
        out_specs=out_spec,
        compiler_params=cparams,
    )(x, pe_arr)


if __name__ == "__main__":
    key = jax.random.PRNGKey(0)
    pe = make_pe(MAX_LEN, D_MODEL)

    # ---- toy shape from the module defaults: [seq=8, batch=2, d_model=10] ----
    seq_len, batch = 8, 2
    x = jax.random.normal(key, (seq_len, batch, D_MODEL), dtype=jnp.float32)

    out = positional_encoding(x, pe, seed=0, p=DROPOUT_P, train=True)
    jax.block_until_ready(out)
    assert out.shape == (seq_len, batch, D_MODEL)
    assert out.dtype == jnp.float32

    out_eval = positional_encoding(x, pe, train=False)
    jax.block_until_ready(out_eval)
    ref = x + pe[:seq_len]
    assert jnp.allclose(out_eval, ref, atol=1e-6), "eval-mode mismatch"

    scaled = ref / (1.0 - DROPOUT_P)
    ok = jnp.isclose(out, 0.0, atol=1e-7) | jnp.isclose(out, scaled, rtol=1e-5, atol=1e-5)
    assert bool(jnp.all(ok)), "train-mode dropout values inconsistent"

    # ---- multi-block grid + VMEM-resident PE path (seq=50, batch=4) ----
    x2 = jax.random.normal(jax.random.PRNGKey(1), (MAX_LEN, 4, D_MODEL), dtype=jnp.float32)
    out2 = positional_encoding(x2, pe, seed=7, p=DROPOUT_P, train=True)
    out2_eval = positional_encoding(x2, pe, train=False)
    jax.block_until_ready((out2, out2_eval))
    ref2 = x2 + pe[:MAX_LEN]
    assert jnp.allclose(out2_eval, ref2, atol=1e-6), "multi-block eval mismatch"
    scaled2 = ref2 / (1.0 - DROPOUT_P)
    ok2 = jnp.isclose(out2, 0.0, atol=1e-7) | jnp.isclose(out2, scaled2, rtol=1e-5, atol=1e-5)
    assert bool(jnp.all(ok2)), "multi-block dropout values inconsistent"

    # ---- bf16 inputs: PE stays f32, add in f32, bf16 output ----
    out_bf = positional_encoding(x.astype(jnp.bfloat16), pe, train=False)
    jax.block_until_ready(out_bf)
    assert out_bf.dtype == jnp.bfloat16
    assert jnp.allclose(out_bf.astype(jnp.float32), ref, atol=5e-2), "bf16 mismatch"

    print("KERNEL_OK")
</pallas_src>

<mosaic_0001>
module attributes {stable_mosaic.version = 11 : i64} {
  func.func @_pe_add_dropout_kernel(%arg0: i32, %arg1: memref<1xi32, #tpu.memory_space<smem>>, %arg2: memref<8x2x10xf32, #tpu.memory_space<vmem>>, %arg3: memref<8x1x10xf32, #tpu.memory_space<vmem>>, %arg4: memref<8x2x10xf32, #tpu.memory_space<vmem>>) attributes {dimension_semantics = [#tpu.dimension_semantics<parallel>], iteration_bounds = array<i64: 1>, scalar_prefetch = 0 : i64, scratch_operands = 0 : i64, tpu.core_type = #tpu.core_type<tc>, window_params = [{transform_indices = @transform_0, window_bounds = array<i64: 1>}, {transform_indices = @transform_1, window_bounds = array<i64: 8, 2, 10>}, {transform_indices = @transform_2, window_bounds = array<i64: 8, 1, 10>}, {transform_indices = @transform_3, window_bounds = array<i64: 8, 2, 10>}]} {
    %c0 = arith.constant 0 : index
    %c0_0 = arith.constant 0 : index
    %c0_1 = arith.constant 0 : index
    %0 = vector.load %arg2[%c0, %c0_0, %c0_1] : memref<8x2x10xf32, #tpu.memory_space<vmem>>, vector<8x2x10xf32>
    %c0_2 = arith.constant 0 : index
    %c0_3 = arith.constant 0 : index
    %c0_4 = arith.constant 0 : index
    %1 = vector.load %arg3[%c0_2, %c0_3, %c0_4] : memref<8x1x10xf32, #tpu.memory_space<vmem>>, vector<8x1x10xf32>
    %2 = vector.broadcast %1 : vector<8x1x10xf32> to vector<8x2x10xf32>
    %3 = arith.addf %0, %2 : vector<8x2x10xf32>
    %c8_i32 = arith.constant 8 : i32
    %4 = arith.muli %arg0, %c8_i32 : i32
    %c20_i32 = arith.constant 20 : i32
    %5 = arith.muli %4, %c20_i32 : i32
    %c-1640531535_i32 = arith.constant -1640531535 : i32
    %6 = arith.muli %5, %c-1640531535_i32 : i32
    %c0_5 = arith.constant 0 : index
    %7 = memref.load %arg1[%c0_5] : memref<1xi32, #tpu.memory_space<smem>>
    %c-2048144777_i32 = arith.constant -2048144777 : i32
    %8 = arith.muli %7, %c-2048144777_i32 : i32
    %9 = arith.addi %6, %8 : i32
    %10 = tpu.iota {dimensions = array<i32: 0>} : vector<8x2x10xi32>
    %11 = tpu.iota {dimensions = array<i32: 1>} : vector<8x2x10xi32>
    %12 = tpu.iota {dimensions = array<i32: 2>} : vector<8x2x10xi32>
    %c20_i32_6 = arith.constant 20 : i32
    %13 = vector.broadcast %c20_i32_6 : i32 to vector<8x2x10xi32>
    %14 = arith.muli %10, %13 : vector<8x2x10xi32>
    %c10_i32 = arith.constant 10 : i32
    %15 = vector.broadcast %c10_i32 : i32 to vector<8x2x10xi32>
    %16 = arith.muli %11, %15 : vector<8x2x10xi32>
    %17 = arith.addi %14, %16 : vector<8x2x10xi32>
    %18 = arith.addi %17, %12 : vector<8x2x10xi32>
    %c-1640531535_i32_7 = arith.constant -1640531535 : i32
    %19 = vector.broadcast %c-1640531535_i32_7 : i32 to vector<8x2x10xi32>
    %20 = arith.muli %18, %19 : vector<8x2x10xi32>
    %21 = vector.broadcast %9 : i32 to vector<8x2x10xi32>
    %22 = arith.addi %20, %21 : vector<8x2x10xi32>
    %c16_i32 = arith.constant 16 : i32
    %23 = vector.broadcast %c16_i32 : i32 to vector<8x2x10xi32>
    %24 = arith.shrui %22, %23 : vector<8x2x10xi32>
    %25 = arith.xori %22, %24 : vector<8x2x10xi32>
    %c-2048144789_i32 = arith.constant -2048144789 : i32
    %26 = vector.broadcast %c-2048144789_i32 : i32 to vector<8x2x10xi32>
    %27 = arith.muli %25, %26 : vector<8x2x10xi32>
    %c13_i32 = arith.constant 13 : i32
    %28 = vector.broadcast %c13_i32 : i32 to vector<8x2x10xi32>
    %29 = arith.shrui %27, %28 : vector<8x2x10xi32>
    %30 = arith.xori %27, %29 : vector<8x2x10xi32>
    %c-1028477387_i32 = arith.constant -1028477387 : i32
    %31 = vector.broadcast %c-1028477387_i32 : i32 to vector<8x2x10xi32>
    %32 = arith.muli %30, %31 : vector<8x2x10xi32>
    %c16_i32_8 = arith.constant 16 : i32
    %33 = vector.broadcast %c16_i32_8 : i32 to vector<8x2x10xi32>
    %34 = arith.shrui %32, %33 : vector<8x2x10xi32>
    %35 = arith.xori %32, %34 : vector<8x2x10xi32>
    %c429496730_i32 = arith.constant 429496730 : i32
    %36 = vector.broadcast %c429496730_i32 : i32 to vector<8x2x10xi32>
    %37 = arith.cmpi uge, %35, %36 : vector<8x2x10xi32>
    %cst = arith.constant 1.11111116 : f32
    %38 = vector.broadcast %cst : f32 to vector<8x2x10xf32>
    %39 = arith.mulf %3, %38 : vector<8x2x10xf32>
    %cst_9 = arith.constant 0.000000e+00 : f32
    %40 = vector.broadcast %cst_9 : f32 to vector<8x2x10xf32>
    %41 = arith.select %37, %39, %40 : vector<8x2x10xi1>, vector<8x2x10xf32>
    %c0_10 = arith.constant 0 : index
    %c0_11 = arith.constant 0 : index
    %c0_12 = arith.constant 0 : index
    %42 = vector.load %arg4[%c0_10, %c0_11, %c0_12] : memref<8x2x10xf32, #tpu.memory_space<vmem>>, vector<8x2x10xf32>
    tpu.vector_store %arg4[%c0_10, %c0_11, %c0_12], %41 {strides = array<i32>} : memref<8x2x10xf32, #tpu.memory_space<vmem>>, vector<8x2x10xf32>,
    return
  }
  func.func @transform_0(%arg0: i32) -> i32 {
    %c0_i32 = arith.constant 0 : i32
    %c0_i32_0 = arith.constant 0 : i32
    return %c0_i32 : i32
  }
  func.func @transform_1(%arg0: i32) -> (i32, i32, i32) {
    %c0_i32 = arith.constant 0 : i32
    %c0_i32_0 = arith.constant 0 : i32
    %c0_i32_1 = arith.constant 0 : i32
    return %arg0, %c0_i32, %c0_i32_0 : i32, i32, i32
  }
  func.func @transform_2(%arg0: i32) -> (i32, i32, i32) {
    %c0_i32 = arith.constant 0 : i32
    %c0_i32_0 = arith.constant 0 : i32
    %c0_i32_1 = arith.constant 0 : i32
    return %arg0, %c0_i32, %c0_i32_0 : i32, i32, i32
  }
  func.func @transform_3(%arg0: i32) -> (i32, i32, i32) {
    %c0_i32 = arith.constant 0 : i32
    %c0_i32_0 = arith.constant 0 : i32
    %c0_i32_1 = arith.constant 0 : i32
    return %arg0, %c0_i32, %c0_i32_0 : i32, i32, i32
  }
}

</mosaic_0001>

<llo_original>
// kernel: tpu_custom_call.1
$region0: #{tpu_custom_call.1}
  #allocation0 [shape = 'u32[]', space=smem, size = 0x4, offset = 0x4, fixed_abs, tag = 'smem constant byte address 0x4 - core index']
  #allocation1 [shape = 'u32[144,128]{1,0:T(1,128)}', space=vmem, size = 0x12000, scoped, tag = 'internal scratch']
  #allocation2 [shape = 's32[1]{0:T(128)S(6)}', space=smem, size = 0x200, scoped, tag = 'scoped memory for tpu_custom_call.1']
  %s0 = inlined_call_operand.<no memory space> [shape: s32[1], index: 0, kind: input, shape index: {}]
  %s1 = inlined_call_operand.hbm [shape: f32[8,2,10], index: 1, kind: input, shape index: {}]
  %s2 = inlined_call_operand.hbm [shape: f32[8,1,10], index: 2, kind: input, shape index: {}]
  %s3 = inlined_call_operand.hbm [shape: f32[8,2,10], index: 3, kind: output, shape index: {}]
  %s4 = sld [smem:[#allocation0]]
  $region30: #{tpu_custom_call.1} parent=0
    _
  %s6 = ssub.s32 1, %s4
  %s7 = scalar_select 0, %s6, %s4
  %8 = sst [smem:[#allocation2]] %s0
  $region1: #{tpu_custom_call.1} parent=0
    #allocation3 [shape = 'u8[8192]{0}', space=vmem, size = 0x2000, scoped, tag = 'input window, operand 1, single buffered']
    #allocation4 [shape = 's32[1]{0}', space=sflag, size = 0x4, scoped, tag = 'scoped memory for tpu_custom_call.1']
    #allocation5 [shape = 's32[1]{0}', space=sflag, size = 0x4, scoped, tag = 'scoped memory for tpu_custom_call.1']
    #allocation6 [shape = 'u8[4096]{0}', space=vmem, size = 0x1000, scoped, tag = 'input window, operand 2, single buffered']
    #allocation7 [shape = 's32[1]{0}', space=sflag, size = 0x4, scoped, tag = 'scoped memory for tpu_custom_call.1']
    #allocation8 [shape = 'u8[8192]{0}', space=vmem, size = 0x2000, scoped, tag = 'output window, operand 0, single buffered']
    %9 = vsyncpa [#allocation4], 0
    %10 = vsyncpa [#allocation7], 0
    %11 = vsyncpa [#allocation5], 0
    // Predicated region
    $region2: #{tpu_custom_call.1} parent=1 // pred_check
      _
    $region3: #{tpu_custom_call.1} parent=1 // pred_check_branch
      %13 = sbr.rel (0) target = $region5
    $region4: #{tpu_custom_call.1} parent=1 // pred_region
      _
    $region5: #{tpu_custom_call.1} parent=1 // pred_fallthru
      _
    // Predicated region
    $region6: #{tpu_custom_call.1} parent=1 // pred_check
      _
    $region7: #{tpu_custom_call.1} parent=1 // pred_check_branch
      %15 = sbr.rel (0) target = $region9
    $region8: #{tpu_custom_call.1} parent=1 // pred_region
      %s17 = ssub.s32 256, 256
      %18 = vsyncadd [#allocation4], %s17
      %s19 = sshll.u32 [#allocation3], 4
      %s20 = int_to_ptr.vmem [resolvable:$true] %s19
      %25 = dma.hbm_to_vmem [thread:$0]  %s1, 256, %s20, [#allocation4], 32, 32, 2
    $region9: #{tpu_custom_call.1} parent=1 // pred_fallthru
      _
    // Predicated region
    $region10: #{tpu_custom_call.1} parent=1 // pred_check
      _
    $region11: #{tpu_custom_call.1} parent=1 // pred_check_branch
      %27 = sbr.rel (0) target = $region13
    $region12: #{tpu_custom_call.1} parent=1 // pred_region
      %s29 = ssub.s32 128, 128
      %30 = vsyncadd [#allocation7], %s29
      %s31 = sshll.u32 [#allocation6], 4
      %s32 = int_to_ptr.vmem [resolvable:$true] %s31
      %37 = dma.hbm_to_vmem [thread:$0]  %s2, 128, %s32, [#allocation7], 16, 16, 1
    $region13: #{tpu_custom_call.1} parent=1 // pred_fallthru
      _
    // Predicated region
    $region14: #{tpu_custom_call.1} parent=1 // pred_check
      _
    $region15: #{tpu_custom_call.1} parent=1 // pred_check_branch
      %39 = sbr.rel (0) target = $region17
    $region16: #{tpu_custom_call.1} parent=1 // pred_region
      %40 = dma.done [#allocation4], 256
    $region17: #{tpu_custom_call.1} parent=1 // pred_fallthru
      _
    // Predicated region
    $region18: #{tpu_custom_call.1} parent=1 // pred_check
      _
    $region19: #{tpu_custom_call.1} parent=1 // pred_check_branch
      %42 = sbr.rel (0) target = $region21
    $region20: #{tpu_custom_call.1} parent=1 // pred_region
      %43 = dma.done [#allocation7], 128
    $region21: #{tpu_custom_call.1} parent=1 // pred_fallthru
      _
    %v44 = vld [vmem:[#allocation3] sm:$0x3]
    %v45 = vld [vmem:[#allocation3 + $0x2] sm:$0x3]
    %v46 = vld [vmem:[#allocation3 + $0x4] sm:$0x3]
    %v47 = vld [vmem:[#allocation3 + $0x6] sm:$0x3]
    %v48 = vld [vmem:[#allocation3 + $0x8] sm:$0x3]
    %v49 = vld [vmem:[#allocation3 + $0xa] sm:$0x3]
    %v50 = vld [vmem:[#allocation3 + $0xc] sm:$0x3]
    %v51 = vld [vmem:[#allocation3 + $0xe] sm:$0x3]
    %v52 = vld [vmem:[#allocation6] sm:$0x1]
    %v53 = vld [vmem:[#allocation6 + $0x1] sm:$0x1]
    %v54 = vld [vmem:[#allocation6 + $0x2] sm:$0x1]
    %v55 = vld [vmem:[#allocation6 + $0x3] sm:$0x1]
    %v56 = vld [vmem:[#allocation6 + $0x4] sm:$0x1]
    %v57 = vld [vmem:[#allocation6 + $0x5] sm:$0x1]
    %v58 = vld [vmem:[#allocation6 + $0x6] sm:$0x1]
    %v59 = vld [vmem:[#allocation6 + $0x7] sm:$0x1]
    %v68 = vlaneseq
    %v69 = vshrl.u32 %v68, 7
    %v70 = vsub.s32 0, %v69
    %v71 = vrot.slane %v52, %v70
    %v72 = vlaneseq
    %v73 = vshrl.u32 %v72, 7
    %v74 = vsub.s32 0, %v73
    %v75 = vrot.slane %v53, %v74
    %v76 = vlaneseq
    %v77 = vshrl.u32 %v76, 7
    %v78 = vsub.s32 0, %v77
    %v79 = vrot.slane %v54, %v78
    %v80 = vlaneseq
    %v81 = vshrl.u32 %v80, 7
    %v82 = vsub.s32 0, %v81
    %v83 = vrot.slane %v55, %v82
    %v84 = vlaneseq
    %v85 = vshrl.u32 %v84, 7
    %v86 = vsub.s32 0, %v85
    %v87 = vrot.slane %v56, %v86
    %v88 = vlaneseq
    %v89 = vshrl.u32 %v88, 7
    %v90 = vsub.s32 0, %v89
    %v91 = vrot.slane %v57, %v90
    %v92 = vlaneseq
    %v93 = vshrl.u32 %v92, 7
    %v94 = vsub.s32 0, %v93
    %v95 = vrot.slane %v58, %v94
    %v96 = vlaneseq
    %v97 = vshrl.u32 %v96, 7
    %v98 = vsub.s32 0, %v97
    %v99 = vrot.slane %v59, %v98
    %v108 = vadd.f32 %v44, %v71
    %v109 = vadd.f32 %v45, %v75
    %v110 = vadd.f32 %v46, %v79
    %v111 = vadd.f32 %v47, %v83
    %v112 = vadd.f32 %v48, %v87
    %v113 = vadd.f32 %v49, %v91
    %v114 = vadd.f32 %v50, %v95
    %v115 = vadd.f32 %v51, %v99
    %s116 = smul.u32 0, 3802926752
    %s117 = sld [smem:[#allocation2]]
    %s118 = smul.u32 %s117, 2246822519
    %s119 = sadd.s32 %s116, %s118
    %v120 = vlaneseq
    %v121 = vshrl.u32 %v120, 7
    %v122 = vlaneseq
    %v123 = vand.u32 %v122, 127
    %v124 = vmul.u32 %v121, 10
    %v125 = vadd.s32 %v124, 20
    %v126 = vadd.s32 %v124, 40
    %v127 = vadd.s32 %v124, 60
    %v128 = vadd.s32 %v124, 80
    %v129 = vadd.s32 %v124, 100
    %v130 = vadd.s32 %v124, 120
    %v131 = vadd.s32 %v124, 140
    %v132 = vadd.s32 %v124, %v123
    %v133 = vadd.s32 %v125, %v123
    %v134 = vadd.s32 %v126, %v123
    %v135 = vadd.s32 %v127, %v123
    %v136 = vadd.s32 %v128, %v123
    %v137 = vadd.s32 %v129, %v123
    %v138 = vadd.s32 %v130, %v123
    %v139 = vadd.s32 %v131, %v123
    %v140 = vmul.u32 %v132, 2654435761
    %v141 = vmul.u32 %v133, 2654435761
    %v142 = vmul.u32 %v134, 2654435761
    %v143 = vmul.u32 %v135, 2654435761
    %v144 = vmul.u32 %v136, 2654435761
    %v145 = vmul.u32 %v137, 2654435761
    %v146 = vmul.u32 %v138, 2654435761
    %v147 = vmul.u32 %v139, 2654435761
    %v148 = vstv %s119
    %v149 = vadd.s32 %v140, %v148
    %v150 = vadd.s32 %v141, %v148
    %v151 = vadd.s32 %v142, %v148
    %v152 = vadd.s32 %v143, %v148
    %v153 = vadd.s32 %v144, %v148
    %v154 = vadd.s32 %v145, %v148
    %v155 = vadd.s32 %v146, %v148
    %v156 = vadd.s32 %v147, %v148
    %v157 = vshrl.u32 %v149, 16
    %v158 = vshrl.u32 %v150, 16
    %v159 = vshrl.u32 %v151, 16
    %v160 = vshrl.u32 %v152, 16
    %v161 = vshrl.u32 %v153, 16
    %v162 = vshrl.u32 %v154, 16
    %v163 = vshrl.u32 %v155, 16
    %v164 = vshrl.u32 %v156, 16
    %v165 = vxor.u32 %v149, %v157
    %v166 = vxor.u32 %v150, %v158
    %v167 = vxor.u32 %v151, %v159
    %v168 = vxor.u32 %v152, %v160
    %v169 = vxor.u32 %v153, %v161
    %v170 = vxor.u32 %v154, %v162
    %v171 = vxor.u32 %v155, %v163
    %v172 = vxor.u32 %v156, %v164
    %v173 = vmul.u32 %v165, 2246822507
    %v174 = vmul.u32 %v166, 2246822507
    %v175 = vmul.u32 %v167, 2246822507
    %v176 = vmul.u32 %v168, 2246822507
    %v177 = vmul.u32 %v169, 2246822507
    %v178 = vmul.u32 %v170, 2246822507
    %v179 = vmul.u32 %v171, 2246822507
    %v180 = vmul.u32 %v172, 2246822507
    %v181 = vshrl.u32 %v173, 13
    %v182 = vshrl.u32 %v174, 13
    %v183 = vshrl.u32 %v175, 13
    %v184 = vshrl.u32 %v176, 13
    %v185 = vshrl.u32 %v177, 13
    %v186 = vshrl.u32 %v178, 13
    %v187 = vshrl.u32 %v179, 13
    %v188 = vshrl.u32 %v180, 13
    %v189 = vxor.u32 %v173, %v181
    %v190 = vxor.u32 %v174, %v182
    %v191 = vxor.u32 %v175, %v183
    %v192 = vxor.u32 %v176, %v184
    %v193 = vxor.u32 %v177, %v185
    %v194 = vxor.u32 %v178, %v186
    %v195 = vxor.u32 %v179, %v187
    %v196 = vxor.u32 %v180, %v188
    %v197 = vmul.u32 %v189, 3266489909
    %v198 = vmul.u32 %v190, 3266489909
    %v199 = vmul.u32 %v191, 3266489909
    %v200 = vmul.u32 %v192, 3266489909
    %v201 = vmul.u32 %v193, 3266489909
    %v202 = vmul.u32 %v194, 3266489909
    %v203 = vmul.u32 %v195, 3266489909
    %v204 = vmul.u32 %v196, 3266489909
    %v205 = vshrl.u32 %v197, 16
    %v206 = vshrl.u32 %v198, 16
    %v207 = vshrl.u32 %v199, 16
    %v208 = vshrl.u32 %v200, 16
    %v209 = vshrl.u32 %v201, 16
    %v210 = vshrl.u32 %v202, 16
    %v211 = vshrl.u32 %v203, 16
    %v212 = vshrl.u32 %v204, 16
    %v213 = vxor.u32 %v197, %v205
    %v214 = vxor.u32 %v198, %v206
    %v215 = vxor.u32 %v199, %v207
    %v216 = vxor.u32 %v200, %v208
    %v217 = vxor.u32 %v201, %v209
    %v218 = vxor.u32 %v202, %v210
    %v219 = vxor.u32 %v203, %v211
    %v220 = vxor.u32 %v204, %v212
    %vm221 = vcmp.ge.u32.totalorder %v213, 429496730
    %vm222 = vcmp.ge.u32.totalorder %v214, 429496730
    %vm223 = vcmp.ge.u32.totalorder %v215, 429496730
    %vm224 = vcmp.ge.u32.totalorder %v216, 429496730
    %vm225 = vcmp.ge.u32.totalorder %v217, 429496730
    %vm226 = vcmp.ge.u32.totalorder %v218, 429496730
    %vm227 = vcmp.ge.u32.totalorder %v219, 429496730
    %vm228 = vcmp.ge.u32.totalorder %v220, 429496730
    %v229 = vmul.f32 %v108, 1.1111112
    %v230 = vmul.f32 %v109, 1.1111112
    %v231 = vmul.f32 %v110, 1.1111112
    %v232 = vmul.f32 %v111, 1.1111112
    %v233 = vmul.f32 %v112, 1.1111112
    %v234 = vmul.f32 %v113, 1.1111112
    %v235 = vmul.f32 %v114, 1.1111112
    %v236 = vmul.f32 %v115, 1.1111112
    %v237 = vsel %vm221, %v229, 0.0
    %v238 = vsel %vm222, %v230, 0.0
    %v239 = vsel %vm223, %v231, 0.0
    %v240 = vsel %vm224, %v232, 0.0
    %v241 = vsel %vm225, %v233, 0.0
    %v242 = vsel %vm226, %v234, 0.0
    %v243 = vsel %vm227, %v235, 0.0
    %v244 = vsel %vm228, %v236, 0.0
    %vm245 = vcmask 74752
    %246 = vst.msk [vmem:[#allocation8] sm:$0x3] %vm245, %v237
    %247 = vst.msk [vmem:[#allocation8 + $0x2] sm:$0x3] %vm245, %v238
    %248 = vst.msk [vmem:[#allocation8 + $0x4] sm:$0x3] %vm245, %v239
    %249 = vst.msk [vmem:[#allocation8 + $0x6] sm:$0x3] %vm245, %v240
    %250 = vst.msk [vmem:[#allocation8 + $0x8] sm:$0x3] %vm245, %v241
    %251 = vst.msk [vmem:[#allocation8 + $0xa] sm:$0x3] %vm245, %v242
    %252 = vst.msk [vmem:[#allocation8 + $0xc] sm:$0x3] %vm245, %v243
    %253 = vst.msk [vmem:[#allocation8 + $0xe] sm:$0x3] %vm245, %v244
    // Predicated region
    $region22: #{tpu_custom_call.1} parent=1 // pred_check
      _
    $region23: #{tpu_custom_call.1} parent=1 // pred_check_branch
      %255 = sbr.rel (0) target = $region25
    $region24: #{tpu_custom_call.1} parent=1 // pred_region
      %s257 = ssub.s32 256, 256
      %258 = vsyncadd [#allocation5], %s257
      %s259 = sshll.u32 [#allocation8], 4
      %s260 = int_to_ptr.vmem [resolvable:$true] %s259
      %265 = dma.vmem_to_hbm [thread:$0]  %s260, 256, %s3, [#allocation5], 32, 32, 2
    $region25: #{tpu_custom_call.1} parent=1 // pred_fallthru
      _
    // Predicated region
    $region26: #{tpu_custom_call.1} parent=1 // pred_check
      _
    $region27: #{tpu_custom_call.1} parent=1 // pred_check_branch
      %267 = sbr.rel (0) target = $region29
    $region28: #{tpu_custom_call.1} parent=1 // pred_region
      %268 = dma.done [#allocation5], 256
    $region29: #{tpu_custom_call.1} parent=1 // pred_fallthru
      _
    %269 = vsyncpa [#allocation4], 1
    %270 = vsyncpa [#allocation7], 1
    %271 = vsyncpa [#allocation5], 1

</llo_original>
